<compile_context>
chip_gen: v7x
topology: tpu7x:2x2x1
jax: 0.10.0
libtpu: 0.0.40
codegen_flags: <defaults>
</compile_context>

<pallas_src>
import functools

import jax
import jax.numpy as jnp
from jax.experimental import pallas as pl
from jax.experimental.pallas import tpu as pltpu


def _lstm_recurrence_kernel(gates_in_ref, w_hh_ref, h_all_ref, hn_ref, cn_ref,
                            *, hidden_size, seq_len):
    """Sequential LSTM recurrence. Only h_{t-1}@W_hh^T + elementwise per step.

    gates_in_ref: (T, B, 4H) precomputed x_t @ W_ih^T + bias (time-major)
    w_hh_ref:     (H, 4H)
    h_all_ref:    (T, B, H) all hidden states (time-major)
    hn_ref/cn_ref:(B, H) final state, written once after the loop
    """
    H = hidden_size
    B = gates_in_ref.shape[1]
    w_hh = w_hh_ref[...]  # (H, 4H), loaded once, stays in vregs/VMEM

    def step(t, carry):
        h_prev, c_prev = carry
        # (B, H) @ (H, 4H) on the MXU + precomputed input projection.
        gates = gates_in_ref[t] + jnp.dot(
            h_prev, w_hh, preferred_element_type=jnp.float32)  # (B, 4H)

        # Full-width transcendentals over the whole (B, 4H) vreg (one EUP pass
        # each), then slice out the gate columns only where strictly needed.
        sig = jax.nn.sigmoid(gates)
        tnh = jnp.tanh(gates)
        i_g = sig[:, 0 * H:1 * H]
        f_g = sig[:, 1 * H:2 * H]
        g_g = tnh[:, 2 * H:3 * H]
        o_g = sig[:, 3 * H:4 * H]

        c_new = f_g * c_prev + i_g * g_g
        h_new = o_g * jnp.tanh(c_new)

        h_all_ref[t] = h_new            # leading-dim store, lane layout preserved
        return (h_new, c_new)

    h0 = jnp.zeros((B, H), jnp.float32)
    c0 = jnp.zeros((B, H), jnp.float32)

    if seq_len <= 32:
        # Short fixed trip count: fully unroll at trace time (static stores).
        carry = (h0, c0)
        for t in range(seq_len):
            carry = step(t, carry)
        h_n, c_n = carry
    else:
        h_n, c_n = jax.lax.fori_loop(0, seq_len, step, (h0, c0))

    # Final state written exactly once (no per-step resident-output stores).
    hn_ref[...] = h_n
    cn_ref[...] = c_n


def lstm_rnn_forward(x, params):
    """x: (B, T, D_in) float32 (batch_first, like PyTorch). Returns ((h_n, c_n), outs)."""
    B, T, D_in = x.shape
    H = params["w_hh"].shape[1]            # w_hh: (4H, H)
    O = params["w_out"].shape[0]           # w_out: (O, H)

    w_ih_t = params["w_ih"].T              # (D_in, 4H)
    w_hh_t = params["w_hh"].T              # (H, 4H)
    bias = params["b_ih"] + params["b_hh"]  # (4H,)
    w_out_t = params["w_out"].T            # (H, O)
    b_out = params["b_out"]                # (O,)

    # Hoisted input projection: one (T*B, D_in)@(D_in, 4H) matmul for all timesteps,
    # emitted directly in time-major layout for cheap leading-dim indexing in-kernel.
    gates_in = jnp.einsum("btd,dg->tbg", x, w_ih_t) + bias      # (T, B, 4H) f32

    kernel = functools.partial(_lstm_recurrence_kernel, hidden_size=H, seq_len=T)

    h_all, h_n, c_n = pl.pallas_call(
        kernel,
        out_shape=(
            jax.ShapeDtypeStruct((T, B, H), jnp.float32),   # all hidden states
            jax.ShapeDtypeStruct((B, H), jnp.float32),      # h_n
            jax.ShapeDtypeStruct((B, H), jnp.float32),      # c_n
        ),
        grid=(1,),                                          # whole sequence resident
        in_specs=[
            pl.BlockSpec((T, B, 4 * H), lambda i: (0, 0, 0)),   # gates_in
            pl.BlockSpec((H, 4 * H), lambda i: (0, 0)),         # W_hh^T
        ],
        out_specs=(
            pl.BlockSpec((T, B, H), lambda i: (0, 0, 0)),       # h_all
            pl.BlockSpec((B, H), lambda i: (0, 0)),             # h_n
            pl.BlockSpec((B, H), lambda i: (0, 0)),             # c_n
        ),
        compiler_params=pltpu.CompilerParams(
            dimension_semantics=("arbitrary",),
        ),
    )(gates_in, w_hh_t)

    # Hoisted per-timestep Linear: one (T*B, H)@(H, O) matmul, written straight
    # back into batch-first (B, T, O) layout (no separate transpose pass).
    outs = jnp.einsum("tbh,ho->bto", h_all, w_out_t) + b_out

    hidden = (h_n[None], c_n[None])        # PyTorch (num_layers=1, B, H)
    return hidden, outs


def _reference_forward(x, params):
    """Pure-JAX reference (matches torch.nn.LSTM + Linear semantics)."""
    B, T, D_in = x.shape
    H = params["w_hh"].shape[1]
    w_ih_t = params["w_ih"].T
    w_hh_t = params["w_hh"].T
    bias = params["b_ih"] + params["b_hh"]

    def step(carry, x_t):
        h, c = carry
        gates = x_t @ w_ih_t + h @ w_hh_t + bias
        i, f, g, o = jnp.split(gates, 4, axis=-1)
        c = jax.nn.sigmoid(f) * c + jax.nn.sigmoid(i) * jnp.tanh(g)
        h = jax.nn.sigmoid(o) * jnp.tanh(c)
        return (h, c), h

    init = (jnp.zeros((B, H), jnp.float32), jnp.zeros((B, H), jnp.float32))
    (h_n, c_n), hs = jax.lax.scan(step, init, jnp.transpose(x, (1, 0, 2)))
    lstm_out = jnp.transpose(hs, (1, 0, 2))
    outs = lstm_out @ params["w_out"].T + params["b_out"]
    return (h_n[None], c_n[None]), outs


def make_params(key, input_size, hidden_size, output_size):
    """Deterministic synthetic params, shaped like the PyTorch module's."""
    ks = jax.random.split(key, 6)
    k_lstm = 1.0 / jnp.sqrt(hidden_size)
    k_lin = 1.0 / jnp.sqrt(hidden_size)
    u = lambda k, shape, b: jax.random.uniform(k, shape, jnp.float32, -b, b)
    return {
        "w_ih": u(ks[0], (4 * hidden_size, input_size), k_lstm),
        "w_hh": u(ks[1], (4 * hidden_size, hidden_size), k_lstm),
        "b_ih": u(ks[2], (4 * hidden_size,), k_lstm),
        "b_hh": u(ks[3], (4 * hidden_size,), k_lstm),
        "w_out": u(ks[4], (output_size, hidden_size), k_lin),
        "b_out": u(ks[5], (output_size,), k_lin),
    }


if __name__ == "__main__":
    B, T, D_in, H, O = 2, 8, 16, 32, 4

    key = jax.random.PRNGKey(0)
    k_x, k_p = jax.random.split(key)
    x = jax.random.normal(k_x, (B, T, D_in), jnp.float32)
    params = make_params(k_p, D_in, H, O)

    (h_n, c_n), outs = jax.block_until_ready(lstm_rnn_forward(x, params))

    # Self-check against pure-JAX reference.
    (h_ref, c_ref), outs_ref = _reference_forward(x, params)
    assert outs.shape == (B, T, O) and h_n.shape == (1, B, H) and c_n.shape == (1, B, H)
    assert jnp.allclose(outs, outs_ref, atol=1e-5, rtol=1e-5)
    assert jnp.allclose(h_n, h_ref, atol=1e-5, rtol=1e-5)
    assert jnp.allclose(c_n, c_ref, atol=1e-5, rtol=1e-5)

    print("KERNEL_OK")
</pallas_src>

<mosaic_0001>
module attributes {stable_mosaic.version = 11 : i64} {
  func.func @_lstm_recurrence_kernel(%arg0: i32, %arg1: memref<8x2x128xf32, #tpu.memory_space<vmem>>, %arg2: memref<32x128xf32, #tpu.memory_space<vmem>>, %arg3: memref<8x2x32xf32, #tpu.memory_space<vmem>>, %arg4: memref<2x32xf32, #tpu.memory_space<vmem>>, %arg5: memref<2x32xf32, #tpu.memory_space<vmem>>) attributes {dimension_semantics = [#tpu.dimension_semantics<arbitrary>], iteration_bounds = array<i64: 1>, scalar_prefetch = 0 : i64, scratch_operands = 0 : i64, tpu.core_type = #tpu.core_type<tc>, window_params = [{pipeline_mode = #tpu.pipeline_mode<synchronous>, transform_indices = @transform_0, window_bounds = array<i64: 8, 2, 128>}, {pipeline_mode = #tpu.pipeline_mode<synchronous>, transform_indices = @transform_1, window_bounds = array<i64: 32, 128>}, {pipeline_mode = #tpu.pipeline_mode<synchronous>, transform_indices = @transform_2, window_bounds = array<i64: 8, 2, 32>}, {pipeline_mode = #tpu.pipeline_mode<synchronous>, transform_indices = @transform_3, window_bounds = array<i64: 2, 32>}, {pipeline_mode = #tpu.pipeline_mode<synchronous>, transform_indices = @transform_4, window_bounds = array<i64: 2, 32>}]} {
    %c0 = arith.constant 0 : index
    %c0_0 = arith.constant 0 : index
    %0 = vector.load %arg2[%c0, %c0_0] : memref<32x128xf32, #tpu.memory_space<vmem>>, vector<32x128xf32>
    %cst = arith.constant 0.000000e+00 : f32
    %1 = vector.broadcast %cst : f32 to vector<2x32xf32>
    %cst_1 = arith.constant 0.000000e+00 : f32
    %2 = vector.broadcast %cst_1 : f32 to vector<2x32xf32>
    %c0_2 = arith.constant 0 : index
    %c0_3 = arith.constant 0 : index
    %c0_4 = arith.constant 0 : index
    %3 = vector.load %arg1[%c0_2, %c0_3, %c0_4] : memref<8x2x128xf32, #tpu.memory_space<vmem>>, vector<1x2x128xf32>
    %4 = vector.shape_cast %3 : vector<1x2x128xf32> to vector<2x128xf32>
    %cst_5 = arith.constant dense<0.000000e+00> : vector<2x128xf32>
    %5 = tpu.matmul %1, %0, %cst_5 {dimension_numbers = #tpu.dot_dimension_numbers<[1], [0], [0], [1], [0, 0, 1, 1], [], []>} : vector<2x32xf32>, vector<32x128xf32>, vector<2x128xf32> -> vector<2x128xf32>
    %6 = arith.addf %4, %5 : vector<2x128xf32>
    %7 = arith.negf %6 : vector<2x128xf32>
    %8 = math.exp %7 : vector<2x128xf32>
    %cst_6 = arith.constant 1.000000e+00 : f32
    %9 = vector.broadcast %cst_6 : f32 to vector<2x128xf32>
    %10 = arith.addf %9, %8 : vector<2x128xf32>
    %11 = arith.divf %9, %10 : vector<2x128xf32>
    %12 = math.tanh %6 : vector<2x128xf32>
    %13 = vector.extract_strided_slice %11 {offsets = [0, 0], sizes = [2, 32], strides = [1, 1]} : vector<2x128xf32> to vector<2x32xf32>
    %14 = vector.extract_strided_slice %11 {offsets = [0, 32], sizes = [2, 32], strides = [1, 1]} : vector<2x128xf32> to vector<2x32xf32>
    %15 = vector.extract_strided_slice %12 {offsets = [0, 64], sizes = [2, 32], strides = [1, 1]} : vector<2x128xf32> to vector<2x32xf32>
    %16 = vector.extract_strided_slice %11 {offsets = [0, 96], sizes = [2, 32], strides = [1, 1]} : vector<2x128xf32> to vector<2x32xf32>
    %17 = arith.mulf %14, %2 : vector<2x32xf32>
    %18 = arith.mulf %13, %15 : vector<2x32xf32>
    %19 = arith.addf %17, %18 : vector<2x32xf32>
    %20 = math.tanh %19 : vector<2x32xf32>
    %21 = arith.mulf %16, %20 : vector<2x32xf32>
    %c0_7 = arith.constant 0 : index
    %c0_8 = arith.constant 0 : index
    %c0_9 = arith.constant 0 : index
    %22 = vector.load %arg3[%c0_7, %c0_8, %c0_9] : memref<8x2x32xf32, #tpu.memory_space<vmem>>, vector<1x2x32xf32>
    %23 = vector.shape_cast %22 : vector<1x2x32xf32> to vector<2x32xf32>
    %24 = vector.shape_cast %21 : vector<2x32xf32> to vector<1x2x32xf32>
    tpu.vector_store %arg3[%c0_7, %c0_8, %c0_9], %24 {strides = array<i32>} : memref<8x2x32xf32, #tpu.memory_space<vmem>>, vector<1x2x32xf32>,
    %c1 = arith.constant 1 : index
    %c0_10 = arith.constant 0 : index
    %c0_11 = arith.constant 0 : index
    %25 = vector.load %arg1[%c1, %c0_10, %c0_11] : memref<8x2x128xf32, #tpu.memory_space<vmem>>, vector<1x2x128xf32>
    %26 = vector.shape_cast %25 : vector<1x2x128xf32> to vector<2x128xf32>
    %cst_12 = arith.constant dense<0.000000e+00> : vector<2x128xf32>
    %27 = tpu.matmul %21, %0, %cst_12 {dimension_numbers = #tpu.dot_dimension_numbers<[1], [0], [0], [1], [0, 0, 1, 1], [], []>} : vector<2x32xf32>, vector<32x128xf32>, vector<2x128xf32> -> vector<2x128xf32>
    %28 = arith.addf %26, %27 : vector<2x128xf32>
    %29 = arith.negf %28 : vector<2x128xf32>
    %30 = math.exp %29 : vector<2x128xf32>
    %cst_13 = arith.constant 1.000000e+00 : f32
    %31 = vector.broadcast %cst_13 : f32 to vector<2x128xf32>
    %32 = arith.addf %31, %30 : vector<2x128xf32>
    %33 = arith.divf %31, %32 : vector<2x128xf32>
    %34 = math.tanh %28 : vector<2x128xf32>
    %35 = vector.extract_strided_slice %33 {offsets = [0, 0], sizes = [2, 32], strides = [1, 1]} : vector<2x128xf32> to vector<2x32xf32>
    %36 = vector.extract_strided_slice %33 {offsets = [0, 32], sizes = [2, 32], strides = [1, 1]} : vector<2x128xf32> to vector<2x32xf32>
    %37 = vector.extract_strided_slice %34 {offsets = [0, 64], sizes = [2, 32], strides = [1, 1]} : vector<2x128xf32> to vector<2x32xf32>
    %38 = vector.extract_strided_slice %33 {offsets = [0, 96], sizes = [2, 32], strides = [1, 1]} : vector<2x128xf32> to vector<2x32xf32>
    %39 = arith.mulf %36, %19 : vector<2x32xf32>
    %40 = arith.mulf %35, %37 : vector<2x32xf32>
    %41 = arith.addf %39, %40 : vector<2x32xf32>
    %42 = math.tanh %41 : vector<2x32xf32>
    %43 = arith.mulf %38, %42 : vector<2x32xf32>
    %c1_14 = arith.constant 1 : index
    %c0_15 = arith.constant 0 : index
    %c0_16 = arith.constant 0 : index
    %44 = vector.load %arg3[%c1_14, %c0_15, %c0_16] : memref<8x2x32xf32, #tpu.memory_space<vmem>>, vector<1x2x32xf32>
    %45 = vector.shape_cast %44 : vector<1x2x32xf32> to vector<2x32xf32>
    %46 = vector.shape_cast %43 : vector<2x32xf32> to vector<1x2x32xf32>
    tpu.vector_store %arg3[%c1_14, %c0_15, %c0_16], %46 {strides = array<i32>} : memref<8x2x32xf32, #tpu.memory_space<vmem>>, vector<1x2x32xf32>,
    %c2 = arith.constant 2 : index
    %c0_17 = arith.constant 0 : index
    %c0_18 = arith.constant 0 : index
    %47 = vector.load %arg1[%c2, %c0_17, %c0_18] : memref<8x2x128xf32, #tpu.memory_space<vmem>>, vector<1x2x128xf32>
    %48 = vector.shape_cast %47 : vector<1x2x128xf32> to vector<2x128xf32>
    %cst_19 = arith.constant dense<0.000000e+00> : vector<2x128xf32>
    %49 = tpu.matmul %43, %0, %cst_19 {dimension_numbers = #tpu.dot_dimension_numbers<[1], [0], [0], [1], [0, 0, 1, 1], [], []>} : vector<2x32xf32>, vector<32x128xf32>, vector<2x128xf32> -> vector<2x128xf32>
    %50 = arith.addf %48, %49 : vector<2x128xf32>
    %51 = arith.negf %50 : vector<2x128xf32>
    %52 = math.exp %51 : vector<2x128xf32>
    %cst_20 = arith.constant 1.000000e+00 : f32
    %53 = vector.broadcast %cst_20 : f32 to vector<2x128xf32>
    %54 = arith.addf %53, %52 : vector<2x128xf32>
    %55 = arith.divf %53, %54 : vector<2x128xf32>
    %56 = math.tanh %50 : vector<2x128xf32>
    %57 = vector.extract_strided_slice %55 {offsets = [0, 0], sizes = [2, 32], strides = [1, 1]} : vector<2x128xf32> to vector<2x32xf32>
    %58 = vector.extract_strided_slice %55 {offsets = [0, 32], sizes = [2, 32], strides = [1, 1]} : vector<2x128xf32> to vector<2x32xf32>
    %59 = vector.extract_strided_slice %56 {offsets = [0, 64], sizes = [2, 32], strides = [1, 1]} : vector<2x128xf32> to vector<2x32xf32>
    %60 = vector.extract_strided_slice %55 {offsets = [0, 96], sizes = [2, 32], strides = [1, 1]} : vector<2x128xf32> to vector<2x32xf32>
    %61 = arith.mulf %58, %41 : vector<2x32xf32>
    %62 = arith.mulf %57, %59 : vector<2x32xf32>
    %63 = arith.addf %61, %62 : vector<2x32xf32>
    %64 = math.tanh %63 : vector<2x32xf32>
    %65 = arith.mulf %60, %64 : vector<2x32xf32>
    %c2_21 = arith.constant 2 : index
    %c0_22 = arith.constant 0 : index
    %c0_23 = arith.constant 0 : index
    %66 = vector.load %arg3[%c2_21, %c0_22, %c0_23] : memref<8x2x32xf32, #tpu.memory_space<vmem>>, vector<1x2x32xf32>
    %67 = vector.shape_cast %66 : vector<1x2x32xf32> to vector<2x32xf32>
    %68 = vector.shape_cast %65 : vector<2x32xf32> to vector<1x2x32xf32>
    tpu.vector_store %arg3[%c2_21, %c0_22, %c0_23], %68 {strides = array<i32>} : memref<8x2x32xf32, #tpu.memory_space<vmem>>, vector<1x2x32xf32>,
    %c3 = arith.constant 3 : index
    %c0_24 = arith.constant 0 : index
    %c0_25 = arith.constant 0 : index
    %69 = vector.load %arg1[%c3, %c0_24, %c0_25] : memref<8x2x128xf32, #tpu.memory_space<vmem>>, vector<1x2x128xf32>
    %70 = vector.shape_cast %69 : vector<1x2x128xf32> to vector<2x128xf32>
    %cst_26 = arith.constant dense<0.000000e+00> : vector<2x128xf32>
    %71 = tpu.matmul %65, %0, %cst_26 {dimension_numbers = #tpu.dot_dimension_numbers<[1], [0], [0], [1], [0, 0, 1, 1], [], []>} : vector<2x32xf32>, vector<32x128xf32>, vector<2x128xf32> -> vector<2x128xf32>
    %72 = arith.addf %70, %71 : vector<2x128xf32>
    %73 = arith.negf %72 : vector<2x128xf32>
    %74 = math.exp %73 : vector<2x128xf32>
    %cst_27 = arith.constant 1.000000e+00 : f32
    %75 = vector.broadcast %cst_27 : f32 to vector<2x128xf32>
    %76 = arith.addf %75, %74 : vector<2x128xf32>
    %77 = arith.divf %75, %76 : vector<2x128xf32>
    %78 = math.tanh %72 : vector<2x128xf32>
    %79 = vector.extract_strided_slice %77 {offsets = [0, 0], sizes = [2, 32], strides = [1, 1]} : vector<2x128xf32> to vector<2x32xf32>
    %80 = vector.extract_strided_slice %77 {offsets = [0, 32], sizes = [2, 32], strides = [1, 1]} : vector<2x128xf32> to vector<2x32xf32>
    %81 = vector.extract_strided_slice %78 {offsets = [0, 64], sizes = [2, 32], strides = [1, 1]} : vector<2x128xf32> to vector<2x32xf32>
    %82 = vector.extract_strided_slice %77 {offsets = [0, 96], sizes = [2, 32], strides = [1, 1]} : vector<2x128xf32> to vector<2x32xf32>
    %83 = arith.mulf %80, %63 : vector<2x32xf32>
    %84 = arith.mulf %79, %81 : vector<2x32xf32>
    %85 = arith.addf %83, %84 : vector<2x32xf32>
    %86 = math.tanh %85 : vector<2x32xf32>
    %87 = arith.mulf %82, %86 : vector<2x32xf32>
    %c3_28 = arith.constant 3 : index
    %c0_29 = arith.constant 0 : index
    %c0_30 = arith.constant 0 : index
    %88 = vector.load %arg3[%c3_28, %c0_29, %c0_30] : memref<8x2x32xf32, #tpu.memory_space<vmem>>, vector<1x2x32xf32>
    %89 = vector.shape_cast %88 : vector<1x2x32xf32> to vector<2x32xf32>
    %90 = vector.shape_cast %87 : vector<2x32xf32> to vector<1x2x32xf32>
    tpu.vector_store %arg3[%c3_28, %c0_29, %c0_30], %90 {strides = array<i32>} : memref<8x2x32xf32, #tpu.memory_space<vmem>>, vector<1x2x32xf32>,
    %c4 = arith.constant 4 : index
    %c0_31 = arith.constant 0 : index
    %c0_32 = arith.constant 0 : index
    %91 = vector.load %arg1[%c4, %c0_31, %c0_32] : memref<8x2x128xf32, #tpu.memory_space<vmem>>, vector<1x2x128xf32>
    %92 = vector.shape_cast %91 : vector<1x2x128xf32> to vector<2x128xf32>
    %cst_33 = arith.constant dense<0.000000e+00> : vector<2x128xf32>
    %93 = tpu.matmul %87, %0, %cst_33 {dimension_numbers = #tpu.dot_dimension_numbers<[1], [0], [0], [1], [0, 0, 1, 1], [], []>} : vector<2x32xf32>, vector<32x128xf32>, vector<2x128xf32> -> vector<2x128xf32>
    %94 = arith.addf %92, %93 : vector<2x128xf32>
    %95 = arith.negf %94 : vector<2x128xf32>
    %96 = math.exp %95 : vector<2x128xf32>
    %cst_34 = arith.constant 1.000000e+00 : f32
    %97 = vector.broadcast %cst_34 : f32 to vector<2x128xf32>
    %98 = arith.addf %97, %96 : vector<2x128xf32>
    %99 = arith.divf %97, %98 : vector<2x128xf32>
    %100 = math.tanh %94 : vector<2x128xf32>
    %101 = vector.extract_strided_slice %99 {offsets = [0, 0], sizes = [2, 32], strides = [1, 1]} : vector<2x128xf32> to vector<2x32xf32>
    %102 = vector.extract_strided_slice %99 {offsets = [0, 32], sizes = [2, 32], strides = [1, 1]} : vector<2x128xf32> to vector<2x32xf32>
    %103 = vector.extract_strided_slice %100 {offsets = [0, 64], sizes = [2, 32], strides = [1, 1]} : vector<2x128xf32> to vector<2x32xf32>
    %104 = vector.extract_strided_slice %99 {offsets = [0, 96], sizes = [2, 32], strides = [1, 1]} : vector<2x128xf32> to vector<2x32xf32>
    %105 = arith.mulf %102, %85 : vector<2x32xf32>
    %106 = arith.mulf %101, %103 : vector<2x32xf32>
    %107 = arith.addf %105, %106 : vector<2x32xf32>
    %108 = math.tanh %107 : vector<2x32xf32>
    %109 = arith.mulf %104, %108 : vector<2x32xf32>
    %c4_35 = arith.constant 4 : index
    %c0_36 = arith.constant 0 : index
    %c0_37 = arith.constant 0 : index
    %110 = vector.load %arg3[%c4_35, %c0_36, %c0_37] : memref<8x2x32xf32, #tpu.memory_space<vmem>>, vector<1x2x32xf32>
    %111 = vector.shape_cast %110 : vector<1x2x32xf32> to vector<2x32xf32>
    %112 = vector.shape_cast %109 : vector<2x32xf32> to vector<1x2x32xf32>
    tpu.vector_store %arg3[%c4_35, %c0_36, %c0_37], %112 {strides = array<i32>} : memref<8x2x32xf32, #tpu.memory_space<vmem>>, vector<1x2x32xf32>,
    %c5 = arith.constant 5 : index
    %c0_38 = arith.constant 0 : index
    %c0_39 = arith.constant 0 : index
    %113 = vector.load %arg1[%c5, %c0_38, %c0_39] : memref<8x2x128xf32, #tpu.memory_space<vmem>>, vector<1x2x128xf32>
    %114 = vector.shape_cast %113 : vector<1x2x128xf32> to vector<2x128xf32>
    %cst_40 = arith.constant dense<0.000000e+00> : vector<2x128xf32>
    %115 = tpu.matmul %109, %0, %cst_40 {dimension_numbers = #tpu.dot_dimension_numbers<[1], [0], [0], [1], [0, 0, 1, 1], [], []>} : vector<2x32xf32>, vector<32x128xf32>, vector<2x128xf32> -> vector<2x128xf32>
    %116 = arith.addf %114, %115 : vector<2x128xf32>
    %117 = arith.negf %116 : vector<2x128xf32>
    %118 = math.exp %117 : vector<2x128xf32>
    %cst_41 = arith.constant 1.000000e+00 : f32
    %119 = vector.broadcast %cst_41 : f32 to vector<2x128xf32>
    %120 = arith.addf %119, %118 : vector<2x128xf32>
    %121 = arith.divf %119, %120 : vector<2x128xf32>
    %122 = math.tanh %116 : vector<2x128xf32>
    %123 = vector.extract_strided_slice %121 {offsets = [0, 0], sizes = [2, 32], strides = [1, 1]} : vector<2x128xf32> to vector<2x32xf32>
    %124 = vector.extract_strided_slice %121 {offsets = [0, 32], sizes = [2, 32], strides = [1, 1]} : vector<2x128xf32> to vector<2x32xf32>
    %125 = vector.extract_strided_slice %122 {offsets = [0, 64], sizes = [2, 32], strides = [1, 1]} : vector<2x128xf32> to vector<2x32xf32>
    %126 = vector.extract_strided_slice %121 {offsets = [0, 96], sizes = [2, 32], strides = [1, 1]} : vector<2x128xf32> to vector<2x32xf32>
    %127 = arith.mulf %124, %107 : vector<2x32xf32>
    %128 = arith.mulf %123, %125 : vector<2x32xf32>
    %129 = arith.addf %127, %128 : vector<2x32xf32>
    %130 = math.tanh %129 : vector<2x32xf32>
    %131 = arith.mulf %126, %130 : vector<2x32xf32>
    %c5_42 = arith.constant 5 : index
    %c0_43 = arith.constant 0 : index
    %c0_44 = arith.constant 0 : index
    %132 = vector.load %arg3[%c5_42, %c0_43, %c0_44] : memref<8x2x32xf32, #tpu.memory_space<vmem>>, vector<1x2x32xf32>
    %133 = vector.shape_cast %132 : vector<1x2x32xf32> to vector<2x32xf32>
    %134 = vector.shape_cast %131 : vector<2x32xf32> to vector<1x2x32xf32>
    tpu.vector_store %arg3[%c5_42, %c0_43, %c0_44], %134 {strides = array<i32>} : memref<8x2x32xf32, #tpu.memory_space<vmem>>, vector<1x2x32xf32>,
    %c6 = arith.constant 6 : index
    %c0_45 = arith.constant 0 : index
    %c0_46 = arith.constant 0 : index
    %135 = vector.load %arg1[%c6, %c0_45, %c0_46] : memref<8x2x128xf32, #tpu.memory_space<vmem>>, vector<1x2x128xf32>
    %136 = vector.shape_cast %135 : vector<1x2x128xf32> to vector<2x128xf32>
    %cst_47 = arith.constant dense<0.000000e+00> : vector<2x128xf32>
    %137 = tpu.matmul %131, %0, %cst_47 {dimension_numbers = #tpu.dot_dimension_numbers<[1], [0], [0], [1], [0, 0, 1, 1], [], []>} : vector<2x32xf32>, vector<32x128xf32>, vector<2x128xf32> -> vector<2x128xf32>
    %138 = arith.addf %136, %137 : vector<2x128xf32>
    %139 = arith.negf %138 : vector<2x128xf32>
    %140 = math.exp %139 : vector<2x128xf32>
    %cst_48 = arith.constant 1.000000e+00 : f32
    %141 = vector.broadcast %cst_48 : f32 to vector<2x128xf32>
    %142 = arith.addf %141, %140 : vector<2x128xf32>
    %143 = arith.divf %141, %142 : vector<2x128xf32>
    %144 = math.tanh %138 : vector<2x128xf32>
    %145 = vector.extract_strided_slice %143 {offsets = [0, 0], sizes = [2, 32], strides = [1, 1]} : vector<2x128xf32> to vector<2x32xf32>
    %146 = vector.extract_strided_slice %143 {offsets = [0, 32], sizes = [2, 32], strides = [1, 1]} : vector<2x128xf32> to vector<2x32xf32>
    %147 = vector.extract_strided_slice %144 {offsets = [0, 64], sizes = [2, 32], strides = [1, 1]} : vector<2x128xf32> to vector<2x32xf32>
    %148 = vector.extract_strided_slice %143 {offsets = [0, 96], sizes = [2, 32], strides = [1, 1]} : vector<2x128xf32> to vector<2x32xf32>
    %149 = arith.mulf %146, %129 : vector<2x32xf32>
    %150 = arith.mulf %145, %147 : vector<2x32xf32>
    %151 = arith.addf %149, %150 : vector<2x32xf32>
    %152 = math.tanh %151 : vector<2x32xf32>
    %153 = arith.mulf %148, %152 : vector<2x32xf32>
    %c6_49 = arith.constant 6 : index
    %c0_50 = arith.constant 0 : index
    %c0_51 = arith.constant 0 : index
    %154 = vector.load %arg3[%c6_49, %c0_50, %c0_51] : memref<8x2x32xf32, #tpu.memory_space<vmem>>, vector<1x2x32xf32>
    %155 = vector.shape_cast %154 : vector<1x2x32xf32> to vector<2x32xf32>
    %156 = vector.shape_cast %153 : vector<2x32xf32> to vector<1x2x32xf32>
    tpu.vector_store %arg3[%c6_49, %c0_50, %c0_51], %156 {strides = array<i32>} : memref<8x2x32xf32, #tpu.memory_space<vmem>>, vector<1x2x32xf32>,
    %c7 = arith.constant 7 : index
    %c0_52 = arith.constant 0 : index
    %c0_53 = arith.constant 0 : index
    %157 = vector.load %arg1[%c7, %c0_52, %c0_53] : memref<8x2x128xf32, #tpu.memory_space<vmem>>, vector<1x2x128xf32>
    %158 = vector.shape_cast %157 : vector<1x2x128xf32> to vector<2x128xf32>
    %cst_54 = arith.constant dense<0.000000e+00> : vector<2x128xf32>
    %159 = tpu.matmul %153, %0, %cst_54 {dimension_numbers = #tpu.dot_dimension_numbers<[1], [0], [0], [1], [0, 0, 1, 1], [], []>} : vector<2x32xf32>, vector<32x128xf32>, vector<2x128xf32> -> vector<2x128xf32>
    %160 = arith.addf %158, %159 : vector<2x128xf32>
    %161 = arith.negf %160 : vector<2x128xf32>
    %162 = math.exp %161 : vector<2x128xf32>
    %cst_55 = arith.constant 1.000000e+00 : f32
    %163 = vector.broadcast %cst_55 : f32 to vector<2x128xf32>
    %164 = arith.addf %163, %162 : vector<2x128xf32>
    %165 = arith.divf %163, %164 : vector<2x128xf32>
    %166 = math.tanh %160 : vector<2x128xf32>
    %167 = vector.extract_strided_slice %165 {offsets = [0, 0], sizes = [2, 32], strides = [1, 1]} : vector<2x128xf32> to vector<2x32xf32>
    %168 = vector.extract_strided_slice %165 {offsets = [0, 32], sizes = [2, 32], strides = [1, 1]} : vector<2x128xf32> to vector<2x32xf32>
    %169 = vector.extract_strided_slice %166 {offsets = [0, 64], sizes = [2, 32], strides = [1, 1]} : vector<2x128xf32> to vector<2x32xf32>
    %170 = vector.extract_strided_slice %165 {offsets = [0, 96], sizes = [2, 32], strides = [1, 1]} : vector<2x128xf32> to vector<2x32xf32>
    %171 = arith.mulf %168, %151 : vector<2x32xf32>
    %172 = arith.mulf %167, %169 : vector<2x32xf32>
    %173 = arith.addf %171, %172 : vector<2x32xf32>
    %174 = math.tanh %173 : vector<2x32xf32>
    %175 = arith.mulf %170, %174 : vector<2x32xf32>
    %c7_56 = arith.constant 7 : index
    %c0_57 = arith.constant 0 : index
    %c0_58 = arith.constant 0 : index
    %176 = vector.load %arg3[%c7_56, %c0_57, %c0_58] : memref<8x2x32xf32, #tpu.memory_space<vmem>>, vector<1x2x32xf32>
    %177 = vector.shape_cast %176 : vector<1x2x32xf32> to vector<2x32xf32>
    %178 = vector.shape_cast %175 : vector<2x32xf32> to vector<1x2x32xf32>
    tpu.vector_store %arg3[%c7_56, %c0_57, %c0_58], %178 {strides = array<i32>} : memref<8x2x32xf32, #tpu.memory_space<vmem>>, vector<1x2x32xf32>,
    %c0_59 = arith.constant 0 : index
    %c0_60 = arith.constant 0 : index
    %179 = vector.load %arg4[%c0_59, %c0_60] : memref<2x32xf32, #tpu.memory_space<vmem>>, vector<2x32xf32>
    tpu.vector_store %arg4[%c0_59, %c0_60], %175 {strides = array<i32>} : memref<2x32xf32, #tpu.memory_space<vmem>>, vector<2x32xf32>,
    %c0_61 = arith.constant 0 : index
    %c0_62 = arith.constant 0 : index
    %180 = vector.load %arg5[%c0_61, %c0_62] : memref<2x32xf32, #tpu.memory_space<vmem>>, vector<2x32xf32>
    tpu.vector_store %arg5[%c0_61, %c0_62], %173 {strides = array<i32>} : memref<2x32xf32, #tpu.memory_space<vmem>>, vector<2x32xf32>,
    return
  }
  func.func @transform_0(%arg0: i32) -> (i32, i32, i32) {
    %c0_i32 = arith.constant 0 : i32
    %c0_i32_0 = arith.constant 0 : i32
    %c0_i32_1 = arith.constant 0 : i32
    %c0_i32_2 = arith.constant 0 : i32
    return %c0_i32, %c0_i32_0, %c0_i32_1 : i32, i32, i32
  }
  func.func @transform_1(%arg0: i32) -> (i32, i32) {
    %c0_i32 = arith.constant 0 : i32
    %c0_i32_0 = arith.constant 0 : i32
    %c0_i32_1 = arith.constant 0 : i32
    return %c0_i32, %c0_i32_0 : i32, i32
  }
  func.func @transform_2(%arg0: i32) -> (i32, i32, i32) {
    %c0_i32 = arith.constant 0 : i32
    %c0_i32_0 = arith.constant 0 : i32
    %c0_i32_1 = arith.constant 0 : i32
    %c0_i32_2 = arith.constant 0 : i32
    return %c0_i32, %c0_i32_0, %c0_i32_1 : i32, i32, i32
  }
  func.func @transform_3(%arg0: i32) -> (i32, i32) {
    %c0_i32 = arith.constant 0 : i32
    %c0_i32_0 = arith.constant 0 : i32
    %c0_i32_1 = arith.constant 0 : i32
    return %c0_i32, %c0_i32_0 : i32, i32
  }
  func.func @transform_4(%arg0: i32) -> (i32, i32) {
    %c0_i32 = arith.constant 0 : i32
    %c0_i32_0 = arith.constant 0 : i32
    %c0_i32_1 = arith.constant 0 : i32
    return %c0_i32, %c0_i32_0 : i32, i32
  }
}

</mosaic_0001>

<llo_original>
// kernel: tpu_custom_call.1
$region0: #{tpu_custom_call.1}
  #allocation0 [shape = 'u32[]', space=smem, size = 0x4, offset = 0x4, fixed_abs, tag = 'smem constant byte address 0x4 - core index']
  #allocation1 [shape = 'u32[144,128]{1,0:T(1,128)}', space=vmem, size = 0x12000, scoped, tag = 'internal scratch']
  %s0 = inlined_call_operand.hbm [shape: f32[8,2,128], index: 0, kind: input, shape index: {}]
  %s1 = inlined_call_operand.hbm [shape: f32[32,128], index: 1, kind: input, shape index: {}]
  %s2 = inlined_call_operand.hbm [shape: f32[8,2,32], index: 2, kind: output, shape index: {0}]
  %s3 = inlined_call_operand.hbm [shape: f32[2,32], index: 3, kind: output, shape index: {1}]
  %s4 = inlined_call_operand.hbm [shape: f32[2,32], index: 4, kind: output, shape index: {2}]
  %5 = xla_tuple %s2, %s3, %s4
  %s6 = sld [smem:[#allocation0]]
  $region42: #{tpu_custom_call.1} parent=0
    _
  %s8 = ssub.s32 1, %s6
  %s9 = scalar_select 0, %s8, %s6
  $region1: #{tpu_custom_call.1} parent=0
    #allocation2 [shape = 'u8[8192]{0}', space=vmem, size = 0x2000, scoped, tag = 'input window, operand 0, single buffered']
    #allocation3 [shape = 's32[1]{0}', space=sflag, size = 0x4, scoped, tag = 'scoped memory for tpu_custom_call.1']
    #allocation4 [shape = 's32[1]{0}', space=sflag, size = 0x4, scoped, tag = 'scoped memory for tpu_custom_call.1']
    #allocation5 [shape = 'u8[16384]{0}', space=vmem, size = 0x4000, scoped, tag = 'input window, operand 1, single buffered']
    #allocation6 [shape = 's32[1]{0}', space=sflag, size = 0x4, scoped, tag = 'scoped memory for tpu_custom_call.1']
    #allocation7 [shape = 'u8[8192]{0}', space=vmem, size = 0x2000, scoped, tag = 'output window, operand 0, single buffered']
    #allocation8 [shape = 'u8[1024]{0}', space=vmem, size = 0x400, scoped, tag = 'output window, operand 1, single buffered']
    #allocation9 [shape = 's32[1]{0}', space=sflag, size = 0x4, scoped, tag = 'scoped memory for tpu_custom_call.1']
    #allocation10 [shape = 'u8[1024]{0}', space=vmem, size = 0x400, scoped, tag = 'output window, operand 2, single buffered']
    %10 = vsyncpa [#allocation3], 0
    %11 = vsyncpa [#allocation6], 0
    %12 = vsyncpa [#allocation4], 0
    %13 = vsyncpa [#allocation9], 0
    // Predicated region
    $region2: #{tpu_custom_call.1} parent=1 // pred_check
      _
    $region3: #{tpu_custom_call.1} parent=1 // pred_check_branch
      %15 = sbr.rel (0) target = $region5
    $region4: #{tpu_custom_call.1} parent=1 // pred_region
      %s17 = ssub.s32 256, 256
      %18 = vsyncadd [#allocation3], %s17
      %s19 = sshll.u32 [#allocation2], 4
      %s20 = int_to_ptr.vmem [resolvable:$true] %s19
      %25 = dma.hbm_to_vmem [thread:$0]  %s0, 256, %s20, [#allocation3], 32, 32, 2
    $region5: #{tpu_custom_call.1} parent=1 // pred_fallthru
      _
    // Predicated region
    $region6: #{tpu_custom_call.1} parent=1 // pred_check
      _
    $region7: #{tpu_custom_call.1} parent=1 // pred_check_branch
      %27 = sbr.rel (0) target = $region9
    $region8: #{tpu_custom_call.1} parent=1 // pred_region
      %s29 = ssub.s32 512, 512
      %30 = vsyncadd [#allocation6], %s29
      %s31 = sshll.u32 [#allocation5], 4
      %s32 = int_to_ptr.vmem [resolvable:$true] %s31
      %37 = dma.hbm_to_vmem [thread:$0]  %s1, 512, %s32, [#allocation6], 128, 128, 8
    $region9: #{tpu_custom_call.1} parent=1 // pred_fallthru
      _
    // Predicated region
    $region10: #{tpu_custom_call.1} parent=1 // pred_check
      _
    $region11: #{tpu_custom_call.1} parent=1 // pred_check_branch
      %39 = sbr.rel (0) target = $region13
    $region12: #{tpu_custom_call.1} parent=1 // pred_region
      %40 = dma.done [#allocation3], 256
    $region13: #{tpu_custom_call.1} parent=1 // pred_fallthru
      _
    // Predicated region
    $region14: #{tpu_custom_call.1} parent=1 // pred_check
      _
    $region15: #{tpu_custom_call.1} parent=1 // pred_check_branch
      %42 = sbr.rel (0) target = $region17
    $region16: #{tpu_custom_call.1} parent=1 // pred_region
      %43 = dma.done [#allocation6], 512
    $region17: #{tpu_custom_call.1} parent=1 // pred_fallthru
      _
    %v44 = vld [vmem:[#allocation5] sm:$0xff]
    %v45 = vld [vmem:[#allocation5 + $0x8] sm:$0xff]
    %v46 = vld [vmem:[#allocation5 + $0x10] sm:$0xff]
    %v47 = vld [vmem:[#allocation5 + $0x18] sm:$0xff]
    %v48 = vld [vmem:[#allocation2] sm:$0x3]
    %vm49 = vcmask 261120
    %v51 = vsel %vm49, 0.0, 0
    %53 = vmatprep.subr.mxu0 0.0
    %54 = vmatpush1.msra.mxu0 %v44
    %55 = vmatprep.subr.mxu0 0.0
    %56 = vmatpush1.msra.mxu0 %v45
    %57 = vmatprep.subr.mxu0 0.0
    %58 = vmatpush1.msra.mxu0 %v46
    %59 = vmatprep.subr.mxu0 0.0
    %60 = vmatpush1.msra.mxu0 %v47
    %61 = vmatprep.subr.mxu0 0.0
    %62 = vmatpush1.msra.mxu0 0.0
    %63 = vmatprep.subr.mxu0 0.0
    %64 = vmatpush1.msra.mxu0 0.0
    %65 = vmatprep.subr.mxu0 0.0
    %66 = vmatpush1.msra.mxu0 0.0
    %67 = vmatprep.subr.mxu0 0.0
    %68 = vmatpush1.msra.mxu0 0.0
    %69 = vmatprep.subr.mxu0 0.0
    %70 = vmatpush1.msra.mxu0 0.0
    %71 = vmatprep.subr.mxu0 0.0
    %72 = vmatpush1.msra.mxu0 0.0
    %73 = vmatprep.subr.mxu0 0.0
    %74 = vmatpush1.msra.mxu0 0.0
    %75 = vmatprep.subr.mxu0 0.0
    %76 = vmatpush1.msra.mxu0 0.0
    %77 = vmatprep.subr.mxu0 0.0
    %78 = vmatpush1.msra.mxu0 0.0
    %79 = vmatprep.subr.mxu0 0.0
    %80 = vmatpush1.msra.mxu0 0.0
    %81 = vmatprep.subr.mxu0 0.0
    %82 = vmatpush1.msra.mxu0 0.0
    %83 = vmatprep.subr.mxu0 0.0
    %84 = vmatpush1.msra.mxu0 0.0
    %85 = vmatprep.subr.mxu0 0.0
    %86 = vmatpush1.msra.mxu0 0.0
    %87 = vmatprep.subr.mxu0 0.0
    %88 = vmatpush1.msra.mxu0 0.0
    %89 = vmatprep.subr.mxu0 0.0
    %90 = vmatpush1.msra.mxu0 0.0
    %91 = vmatprep.subr.mxu0 0.0
    %92 = vmatpush1.msra.mxu0 0.0
    %93 = vmatprep.subr.mxu0 0.0
    %94 = vmatpush1.msra.mxu0 0.0
    %95 = vmatprep.subr.mxu0 0.0
    %96 = vmatpush1.msra.mxu0 0.0
    %97 = vmatprep.subr.mxu0 0.0
    %98 = vmatpush1.msra.mxu0 0.0
    %99 = vmatprep.subr.mxu0 0.0
    %100 = vmatpush1.msra.mxu0 0.0
    %101 = vmatprep.subr.mxu0 0.0
    %102 = vmatpush1.msra.mxu0 0.0
    %103 = vmatprep.subr.mxu0 0.0
    %104 = vmatpush1.msra.mxu0 0.0
    %105 = vmatprep.subr.mxu0 0.0
    %106 = vmatpush1.msra.mxu0 0.0
    %107 = vmatprep.subr.mxu0 0.0
    %108 = vmatpush1.msra.mxu0 0.0
    %109 = vmatprep.subr.mxu0 0.0
    %110 = vmatpush1.msra.mxu0 0.0
    %111 = vmatprep.subr.mxu0 0.0
    %112 = vmatpush1.msra.mxu0 0.0
    %113 = vmatprep.subr.mxu0 0.0
    %114 = vmatpush1.msra.mxu0 0.0
    %115 = vmatprep.subr.mxu0 0.0
    %116 = vmatpush1.msra.mxu0 0.0
    %117 = vmatprep.mubr.f32.mxu0 0.0
    %118 = vmatmul.mubr.f32.gmra.mrb[0].mxu0 %v51
    %v119 = vpop.f32.mrb[0].mxu0
    %v120 = vadd.f32 0.0, %v119
    %v121 = vpop.f32.mrb[0].mxu0
    %122 = vdwg.mxu0
    %v123 = vadd.f32 %v48, %v120
    %v124 = vxor.u32 %v123, 2147483648
    %v125 = vmul.f32 %v124, 1.442695
    %v126 = vpow.pop %v125
    %v127 = vadd.f32 %v126, 1.0
    %v128 = vrcp.pop %v127
    %v129 = vmul.f32 1.0, %v128
    %v130 = vtanh.pop %v123
    %v131 = vmul.f32 %v129, 0.0
    %133 = vrot.lane.b32.xlu0 %v130, 64
    %v134 = vpop.permute.xlu0 %133
    %v136 = vmul.f32 %v129, %v134
    %138 = vrot.lane.b32.xlu0 %v136, 32
    %v139 = vpop.permute.xlu0 %138
    %v141 = vadd.f32 %v131, %v139
    %v142 = vtanh.pop %v141
    %144 = vrot.lane.b32.xlu0 %v142, 64
    %v145 = vpop.permute.xlu0 %144
    %v147 = vmul.f32 %v129, %v145
    %149 = vrot.lane.b32.xlu0 %v147, 32
    %v150 = vpop.permute.xlu0 %149
    %vm152 = vcmask 254976
    %153 = vst.msk [vmem:[#allocation7] sm:$0x3] %vm152, %v150
    %s154 = scalar_lea.vmem [#allocation2], 2
    %v155 = vld [vmem:[%s154] sm:$0x3]
    %v156 = vsel %vm49, %v150, 0
    %158 = vmatprep.subr.mxu0 0.0
    %159 = vmatpush1.msra.mxu0 %v44
    %160 = vmatprep.subr.mxu0 0.0
    %161 = vmatpush1.msra.mxu0 %v45
    %162 = vmatprep.subr.mxu0 0.0
    %163 = vmatpush1.msra.mxu0 %v46
    %164 = vmatprep.subr.mxu0 0.0
    %165 = vmatpush1.msra.mxu0 %v47
    %166 = vmatprep.subr.mxu0 0.0
    %167 = vmatpush1.msra.mxu0 0.0
    %168 = vmatprep.subr.mxu0 0.0
    %169 = vmatpush1.msra.mxu0 0.0
    %170 = vmatprep.subr.mxu0 0.0
    %171 = vmatpush1.msra.mxu0 0.0
    %172 = vmatprep.subr.mxu0 0.0
    %173 = vmatpush1.msra.mxu0 0.0
    %174 = vmatprep.subr.mxu0 0.0
    %175 = vmatpush1.msra.mxu0 0.0
    %176 = vmatprep.subr.mxu0 0.0
    %177 = vmatpush1.msra.mxu0 0.0
    %178 = vmatprep.subr.mxu0 0.0
    %179 = vmatpush1.msra.mxu0 0.0
    %180 = vmatprep.subr.mxu0 0.0
    %181 = vmatpush1.msra.mxu0 0.0
    %182 = vmatprep.subr.mxu0 0.0
    %183 = vmatpush1.msra.mxu0 0.0
    %184 = vmatprep.subr.mxu0 0.0
    %185 = vmatpush1.msra.mxu0 0.0
    %186 = vmatprep.subr.mxu0 0.0
    %187 = vmatpush1.msra.mxu0 0.0
    %188 = vmatprep.subr.mxu0 0.0
    %189 = vmatpush1.msra.mxu0 0.0
    %190 = vmatprep.subr.mxu0 0.0
    %191 = vmatpush1.msra.mxu0 0.0
    %192 = vmatprep.subr.mxu0 0.0
    %193 = vmatpush1.msra.mxu0 0.0
    %194 = vmatprep.subr.mxu0 0.0
    %195 = vmatpush1.msra.mxu0 0.0
    %196 = vmatprep.subr.mxu0 0.0
    %197 = vmatpush1.msra.mxu0 0.0
    %198 = vmatprep.subr.mxu0 0.0
    %199 = vmatpush1.msra.mxu0 0.0
    %200 = vmatprep.subr.mxu0 0.0
    %201 = vmatpush1.msra.mxu0 0.0
    %202 = vmatprep.subr.mxu0 0.0
    %203 = vmatpush1.msra.mxu0 0.0
    %204 = vmatprep.subr.mxu0 0.0
    %205 = vmatpush1.msra.mxu0 0.0
    %206 = vmatprep.subr.mxu0 0.0
    %207 = vmatpush1.msra.mxu0 0.0
    %208 = vmatprep.subr.mxu0 0.0
    %209 = vmatpush1.msra.mxu0 0.0
    %210 = vmatprep.subr.mxu0 0.0
    %211 = vmatpush1.msra.mxu0 0.0
    %212 = vmatprep.subr.mxu0 0.0
    %213 = vmatpush1.msra.mxu0 0.0
    %214 = vmatprep.subr.mxu0 0.0
    %215 = vmatpush1.msra.mxu0 0.0
    %216 = vmatprep.subr.mxu0 0.0
    %217 = vmatpush1.msra.mxu0 0.0
    %218 = vmatprep.subr.mxu0 0.0
    %219 = vmatpush1.msra.mxu0 0.0
    %220 = vmatprep.subr.mxu0 0.0
    %221 = vmatpush1.msra.mxu0 0.0
    %222 = vmatprep.mubr.f32.mxu0 0.0
    %223 = vmatmul.mubr.f32.gmra.mrb[0].mxu0 %v156
    %v224 = vpop.f32.mrb[0].mxu0
    %v225 = vadd.f32 0.0, %v224
    %v226 = vpop.f32.mrb[0].mxu0
    %227 = vdwg.mxu0
    %v228 = vadd.f32 %v155, %v225
    %v229 = vxor.u32 %v228, 2147483648
    %v230 = vmul.f32 %v229, 1.442695
    %v231 = vpow.pop %v230
    %v232 = vadd.f32 %v231, 1.0
    %v233 = vrcp.pop %v232
    %v234 = vmul.f32 1.0, %v233
    %v235 = vtanh.pop %v228
    %v236 = vmul.f32 %v234, %v141
    %238 = vrot.lane.b32.xlu0 %v235, 64
    %v239 = vpop.permute.xlu0 %238
    %v241 = vmul.f32 %v234, %v239
    %243 = vrot.lane.b32.xlu0 %v241, 32
    %v244 = vpop.permute.xlu0 %243
    %v246 = vadd.f32 %v236, %v244
    %v247 = vtanh.pop %v246
    %249 = vrot.lane.b32.xlu0 %v247, 64
    %v250 = vpop.permute.xlu0 %249
    %v252 = vmul.f32 %v234, %v250
    %254 = vrot.lane.b32.xlu0 %v252, 32
    %v255 = vpop.permute.xlu0 %254
    %s257 = scalar_lea.vmem [#allocation7], 2
    %258 = vst.msk [vmem:[%s257] sm:$0x3] %vm152, %v255
    %s259 = scalar_lea.vmem [#allocation2], 4
    %v260 = vld [vmem:[%s259] sm:$0x3]
    %v261 = vsel %vm49, %v255, 0
    %263 = vmatprep.subr.mxu0 0.0
    %264 = vmatpush1.msra.mxu0 %v44
    %265 = vmatprep.subr.mxu0 0.0
    %266 = vmatpush1.msra.mxu0 %v45
    %267 = vmatprep.subr.mxu0 0.0
    %268 = vmatpush1.msra.mxu0 %v46
    %269 = vmatprep.subr.mxu0 0.0
    %270 = vmatpush1.msra.mxu0 %v47
    %271 = vmatprep.subr.mxu0 0.0
    %272 = vmatpush1.msra.mxu0 0.0
    %273 = vmatprep.subr.mxu0 0.0
    %274 = vmatpush1.msra.mxu0 0.0
    %275 = vmatprep.subr.mxu0 0.0
    %276 = vmatpush1.msra.mxu0 0.0
    %277 = vmatprep.subr.mxu0 0.0
    %278 = vmatpush1.msra.mxu0 0.0
    %279 = vmatprep.subr.mxu0 0.0
    %280 = vmatpush1.msra.mxu0 0.0
    %281 = vmatprep.subr.mxu0 0.0
    %282 = vmatpush1.msra.mxu0 0.0
    %283 = vmatprep.subr.mxu0 0.0
    %284 = vmatpush1.msra.mxu0 0.0
    %285 = vmatprep.subr.mxu0 0.0
    %286 = vmatpush1.msra.mxu0 0.0
    %287 = vmatprep.subr.mxu0 0.0
    %288 = vmatpush1.msra.mxu0 0.0
    %289 = vmatprep.subr.mxu0 0.0
    %290 = vmatpush1.msra.mxu0 0.0
    %291 = vmatprep.subr.mxu0 0.0
    %292 = vmatpush1.msra.mxu0 0.0
    %293 = vmatprep.subr.mxu0 0.0
    %294 = vmatpush1.msra.mxu0 0.0
    %295 = vmatprep.subr.mxu0 0.0
    %296 = vmatpush1.msra.mxu0 0.0
    %297 = vmatprep.subr.mxu0 0.0
    %298 = vmatpush1.msra.mxu0 0.0
    %299 = vmatprep.subr.mxu0 0.0
    %300 = vmatpush1.msra.mxu0 0.0
    %301 = vmatprep.subr.mxu0 0.0
    %302 = vmatpush1.msra.mxu0 0.0
    %303 = vmatprep.subr.mxu0 0.0
    %304 = vmatpush1.msra.mxu0 0.0
    %305 = vmatprep.subr.mxu0 0.0
    %306 = vmatpush1.msra.mxu0 0.0
    %307 = vmatprep.subr.mxu0 0.0
    %308 = vmatpush1.msra.mxu0 0.0
    %309 = vmatprep.subr.mxu0 0.0
    %310 = vmatpush1.msra.mxu0 0.0
    %311 = vmatprep.subr.mxu0 0.0
    %312 = vmatpush1.msra.mxu0 0.0
    %313 = vmatprep.subr.mxu0 0.0
    %314 = vmatpush1.msra.mxu0 0.0
    %315 = vmatprep.subr.mxu0 0.0
    %316 = vmatpush1.msra.mxu0 0.0
    %317 = vmatprep.subr.mxu0 0.0
    %318 = vmatpush1.msra.mxu0 0.0
    %319 = vmatprep.subr.mxu0 0.0
    %320 = vmatpush1.msra.mxu0 0.0
    %321 = vmatprep.subr.mxu0 0.0
    %322 = vmatpush1.msra.mxu0 0.0
    %323 = vmatprep.subr.mxu0 0.0
    %324 = vmatpush1.msra.mxu0 0.0
    %325 = vmatprep.subr.mxu0 0.0
    %326 = vmatpush1.msra.mxu0 0.0
    %327 = vmatprep.mubr.f32.mxu0 0.0
    %328 = vmatmul.mubr.f32.gmra.mrb[0].mxu0 %v261
    %v329 = vpop.f32.mrb[0].mxu0
    %v330 = vadd.f32 0.0, %v329
    %v331 = vpop.f32.mrb[0].mxu0
    %332 = vdwg.mxu0
    %v333 = vadd.f32 %v260, %v330
    %v334 = vxor.u32 %v333, 2147483648
    %v335 = vmul.f32 %v334, 1.442695
    %v336 = vpow.pop %v335
    %v337 = vadd.f32 %v336, 1.0
    %v338 = vrcp.pop %v337
    %v339 = vmul.f32 1.0, %v338
    %v340 = vtanh.pop %v333
    %v341 = vmul.f32 %v339, %v246
    %343 = vrot.lane.b32.xlu0 %v340, 64
    %v344 = vpop.permute.xlu0 %343
    %v346 = vmul.f32 %v339, %v344
    %348 = vrot.lane.b32.xlu0 %v346, 32
    %v349 = vpop.permute.xlu0 %348
    %v351 = vadd.f32 %v341, %v349
    %v352 = vtanh.pop %v351
    %354 = vrot.lane.b32.xlu0 %v352, 64
    %v355 = vpop.permute.xlu0 %354
    %v357 = vmul.f32 %v339, %v355
    %359 = vrot.lane.b32.xlu0 %v357, 32
    %v360 = vpop.permute.xlu0 %359
    %s362 = scalar_lea.vmem [#allocation7], 4
    %363 = vst.msk [vmem:[%s362] sm:$0x3] %vm152, %v360
    %s364 = scalar_lea.vmem [#allocation2], 6
    %v365 = vld [vmem:[%s364] sm:$0x3]
    %v366 = vsel %vm49, %v360, 0
    %368 = vmatprep.subr.mxu0 0.0
    %369 = vmatpush1.msra.mxu0 %v44
    %370 = vmatprep.subr.mxu0 0.0
    %371 = vmatpush1.msra.mxu0 %v45
    %372 = vmatprep.subr.mxu0 0.0
    %373 = vmatpush1.msra.mxu0 %v46
    %374 = vmatprep.subr.mxu0 0.0
    %375 = vmatpush1.msra.mxu0 %v47
    %376 = vmatprep.subr.mxu0 0.0
    %377 = vmatpush1.msra.mxu0 0.0
    %378 = vmatprep.subr.mxu0 0.0
    %379 = vmatpush1.msra.mxu0 0.0
    %380 = vmatprep.subr.mxu0 0.0
    %381 = vmatpush1.msra.mxu0 0.0
    %382 = vmatprep.subr.mxu0 0.0
    %383 = vmatpush1.msra.mxu0 0.0
    %384 = vmatprep.subr.mxu0 0.0
    %385 = vmatpush1.msra.mxu0 0.0
    %386 = vmatprep.subr.mxu0 0.0
    %387 = vmatpush1.msra.mxu0 0.0
    %388 = vmatprep.subr.mxu0 0.0
    %389 = vmatpush1.msra.mxu0 0.0
    %390 = vmatprep.subr.mxu0 0.0
    %391 = vmatpush1.msra.mxu0 0.0
    %392 = vmatprep.subr.mxu0 0.0
    %393 = vmatpush1.msra.mxu0 0.0
    %394 = vmatprep.subr.mxu0 0.0
    %395 = vmatpush1.msra.mxu0 0.0
    %396 = vmatprep.subr.mxu0 0.0
    %397 = vmatpush1.msra.mxu0 0.0
    %398 = vmatprep.subr.mxu0 0.0
    %399 = vmatpush1.msra.mxu0 0.0
    %400 = vmatprep.subr.mxu0 0.0
    %401 = vmatpush1.msra.mxu0 0.0
    %402 = vmatprep.subr.mxu0 0.0
    %403 = vmatpush1.msra.mxu0 0.0
    %404 = vmatprep.subr.mxu0 0.0
    %405 = vmatpush1.msra.mxu0 0.0
    %406 = vmatprep.subr.mxu0 0.0
    %407 = vmatpush1.msra.mxu0 0.0
    %408 = vmatprep.subr.mxu0 0.0
    %409 = vmatpush1.msra.mxu0 0.0
    %410 = vmatprep.subr.mxu0 0.0
    %411 = vmatpush1.msra.mxu0 0.0
    %412 = vmatprep.subr.mxu0 0.0
    %413 = vmatpush1.msra.mxu0 0.0
    %414 = vmatprep.subr.mxu0 0.0
    %415 = vmatpush1.msra.mxu0 0.0
    %416 = vmatprep.subr.mxu0 0.0
    %417 = vmatpush1.msra.mxu0 0.0
    %418 = vmatprep.subr.mxu0 0.0
    %419 = vmatpush1.msra.mxu0 0.0
    %420 = vmatprep.subr.mxu0 0.0
    %421 = vmatpush1.msra.mxu0 0.0
    %422 = vmatprep.subr.mxu0 0.0
    %423 = vmatpush1.msra.mxu0 0.0
    %424 = vmatprep.subr.mxu0 0.0
    %425 = vmatpush1.msra.mxu0 0.0
    %426 = vmatprep.subr.mxu0 0.0
    %427 = vmatpush1.msra.mxu0 0.0
    %428 = vmatprep.subr.mxu0 0.0
    %429 = vmatpush1.msra.mxu0 0.0
    %430 = vmatprep.subr.mxu0 0.0
    %431 = vmatpush1.msra.mxu0 0.0
    %432 = vmatprep.mubr.f32.mxu0 0.0
    %433 = vmatmul.mubr.f32.gmra.mrb[0].mxu0 %v366
    %v434 = vpop.f32.mrb[0].mxu0
    %v435 = vadd.f32 0.0, %v434
    %v436 = vpop.f32.mrb[0].mxu0
    %437 = vdwg.mxu0
    %v438 = vadd.f32 %v365, %v435
    %v439 = vxor.u32 %v438, 2147483648
    %v440 = vmul.f32 %v439, 1.442695
    %v441 = vpow.pop %v440
    %v442 = vadd.f32 %v441, 1.0
    %v443 = vrcp.pop %v442
    %v444 = vmul.f32 1.0, %v443
    %v445 = vtanh.pop %v438
    %v446 = vmul.f32 %v444, %v351
    %448 = vrot.lane.b32.xlu0 %v445, 64
    %v449 = vpop.permute.xlu0 %448
    %v451 = vmul.f32 %v444, %v449
    %453 = vrot.lane.b32.xlu0 %v451, 32
    %v454 = vpop.permute.xlu0 %453
    %v456 = vadd.f32 %v446, %v454
    %v457 = vtanh.pop %v456
    %459 = vrot.lane.b32.xlu0 %v457, 64
    %v460 = vpop.permute.xlu0 %459
    %v462 = vmul.f32 %v444, %v460
    %464 = vrot.lane.b32.xlu0 %v462, 32
    %v465 = vpop.permute.xlu0 %464
    %s467 = scalar_lea.vmem [#allocation7], 6
    %468 = vst.msk [vmem:[%s467] sm:$0x3] %vm152, %v465
    %s469 = scalar_lea.vmem [#allocation2], 8
    %v470 = vld [vmem:[%s469] sm:$0x3]
    %v471 = vsel %vm49, %v465, 0
    %473 = vmatprep.subr.mxu0 0.0
    %474 = vmatpush1.msra.mxu0 %v44
    %475 = vmatprep.subr.mxu0 0.0
    %476 = vmatpush1.msra.mxu0 %v45
    %477 = vmatprep.subr.mxu0 0.0
    %478 = vmatpush1.msra.mxu0 %v46
    %479 = vmatprep.subr.mxu0 0.0
    %480 = vmatpush1.msra.mxu0 %v47
    %481 = vmatprep.subr.mxu0 0.0
    %482 = vmatpush1.msra.mxu0 0.0
    %483 = vmatprep.subr.mxu0 0.0
    %484 = vmatpush1.msra.mxu0 0.0
    %485 = vmatprep.subr.mxu0 0.0
    %486 = vmatpush1.msra.mxu0 0.0
    %487 = vmatprep.subr.mxu0 0.0
    %488 = vmatpush1.msra.mxu0 0.0
    %489 = vmatprep.subr.mxu0 0.0
    %490 = vmatpush1.msra.mxu0 0.0
    %491 = vmatprep.subr.mxu0 0.0
    %492 = vmatpush1.msra.mxu0 0.0
    %493 = vmatprep.subr.mxu0 0.0
    %494 = vmatpush1.msra.mxu0 0.0
    %495 = vmatprep.subr.mxu0 0.0
    %496 = vmatpush1.msra.mxu0 0.0
    %497 = vmatprep.subr.mxu0 0.0
    %498 = vmatpush1.msra.mxu0 0.0
    %499 = vmatprep.subr.mxu0 0.0
    %500 = vmatpush1.msra.mxu0 0.0
    %501 = vmatprep.subr.mxu0 0.0
    %502 = vmatpush1.msra.mxu0 0.0
    %503 = vmatprep.subr.mxu0 0.0
    %504 = vmatpush1.msra.mxu0 0.0
    %505 = vmatprep.subr.mxu0 0.0
    %506 = vmatpush1.msra.mxu0 0.0
    %507 = vmatprep.subr.mxu0 0.0
    %508 = vmatpush1.msra.mxu0 0.0
    %509 = vmatprep.subr.mxu0 0.0
    %510 = vmatpush1.msra.mxu0 0.0
    %511 = vmatprep.subr.mxu0 0.0
    %512 = vmatpush1.msra.mxu0 0.0
    %513 = vmatprep.subr.mxu0 0.0
    %514 = vmatpush1.msra.mxu0 0.0
    %515 = vmatprep.subr.mxu0 0.0
    %516 = vmatpush1.msra.mxu0 0.0
    %517 = vmatprep.subr.mxu0 0.0
    %518 = vmatpush1.msra.mxu0 0.0
    %519 = vmatprep.subr.mxu0 0.0
    %520 = vmatpush1.msra.mxu0 0.0
    %521 = vmatprep.subr.mxu0 0.0
    %522 = vmatpush1.msra.mxu0 0.0
    %523 = vmatprep.subr.mxu0 0.0
    %524 = vmatpush1.msra.mxu0 0.0
    %525 = vmatprep.subr.mxu0 0.0
    %526 = vmatpush1.msra.mxu0 0.0
    %527 = vmatprep.subr.mxu0 0.0
    %528 = vmatpush1.msra.mxu0 0.0
    %529 = vmatprep.subr.mxu0 0.0
    %530 = vmatpush1.msra.mxu0 0.0
    %531 = vmatprep.subr.mxu0 0.0
    %532 = vmatpush1.msra.mxu0 0.0
    %533 = vmatprep.subr.mxu0 0.0
    %534 = vmatpush1.msra.mxu0 0.0
    %535 = vmatprep.subr.mxu0 0.0
    %536 = vmatpush1.msra.mxu0 0.0
    %537 = vmatprep.mubr.f32.mxu0 0.0
    %538 = vmatmul.mubr.f32.gmra.mrb[0].mxu0 %v471
    %v539 = vpop.f32.mrb[0].mxu0
    %v540 = vadd.f32 0.0, %v539
    %v541 = vpop.f32.mrb[0].mxu0
    %542 = vdwg.mxu0
    %v543 = vadd.f32 %v470, %v540
    %v544 = vxor.u32 %v543, 2147483648
    %v545 = vmul.f32 %v544, 1.442695
    %v546 = vpow.pop %v545
    %v547 = vadd.f32 %v546, 1.0
    %v548 = vrcp.pop %v547
    %v549 = vmul.f32 1.0, %v548
    %v550 = vtanh.pop %v543
    %v551 = vmul.f32 %v549, %v456
    %553 = vrot.lane.b32.xlu0 %v550, 64
    %v554 = vpop.permute.xlu0 %553
    %v556 = vmul.f32 %v549, %v554
    %558 = vrot.lane.b32.xlu0 %v556, 32
    %v559 = vpop.permute.xlu0 %558
    %v561 = vadd.f32 %v551, %v559
    %v562 = vtanh.pop %v561
    %564 = vrot.lane.b32.xlu0 %v562, 64
    %v565 = vpop.permute.xlu0 %564
    %v567 = vmul.f32 %v549, %v565
    %569 = vrot.lane.b32.xlu0 %v567, 32
    %v570 = vpop.permute.xlu0 %569
    %s572 = scalar_lea.vmem [#allocation7], 8
    %573 = vst.msk [vmem:[%s572] sm:$0x3] %vm152, %v570
    %s574 = scalar_lea.vmem [#allocation2], 10
    %v575 = vld [vmem:[%s574] sm:$0x3]
    %v576 = vsel %vm49, %v570, 0
    %578 = vmatprep.subr.mxu0 0.0
    %579 = vmatpush1.msra.mxu0 %v44
    %580 = vmatprep.subr.mxu0 0.0
    %581 = vmatpush1.msra.mxu0 %v45
    %582 = vmatprep.subr.mxu0 0.0
    %583 = vmatpush1.msra.mxu0 %v46
    %584 = vmatprep.subr.mxu0 0.0
    %585 = vmatpush1.msra.mxu0 %v47
    %586 = vmatprep.subr.mxu0 0.0
    %587 = vmatpush1.msra.mxu0 0.0
    %588 = vmatprep.subr.mxu0 0.0
    %589 = vmatpush1.msra.mxu0 0.0
    %590 = vmatprep.subr.mxu0 0.0
    %591 = vmatpush1.msra.mxu0 0.0
    %592 = vmatprep.subr.mxu0 0.0
    %593 = vmatpush1.msra.mxu0 0.0
    %594 = vmatprep.subr.mxu0 0.0
    %595 = vmatpush1.msra.mxu0 0.0
    %596 = vmatprep.subr.mxu0 0.0
    %597 = vmatpush1.msra.mxu0 0.0
    %598 = vmatprep.subr.mxu0 0.0
    %599 = vmatpush1.msra.mxu0 0.0
    %600 = vmatprep.subr.mxu0 0.0
    %601 = vmatpush1.msra.mxu0 0.0
    %602 = vmatprep.subr.mxu0 0.0
    %603 = vmatpush1.msra.mxu0 0.0
    %604 = vmatprep.subr.mxu0 0.0
    %605 = vmatpush1.msra.mxu0 0.0
    %606 = vmatprep.subr.mxu0 0.0
    %607 = vmatpush1.msra.mxu0 0.0
    %608 = vmatprep.subr.mxu0 0.0
    %609 = vmatpush1.msra.mxu0 0.0
    %610 = vmatprep.subr.mxu0 0.0
    %611 = vmatpush1.msra.mxu0 0.0
    %612 = vmatprep.subr.mxu0 0.0
    %613 = vmatpush1.msra.mxu0 0.0
    %614 = vmatprep.subr.mxu0 0.0
    %615 = vmatpush1.msra.mxu0 0.0
    %616 = vmatprep.subr.mxu0 0.0
    %617 = vmatpush1.msra.mxu0 0.0
    %618 = vmatprep.subr.mxu0 0.0
    %619 = vmatpush1.msra.mxu0 0.0
    %620 = vmatprep.subr.mxu0 0.0
    %621 = vmatpush1.msra.mxu0 0.0
    %622 = vmatprep.subr.mxu0 0.0
    %623 = vmatpush1.msra.mxu0 0.0
    %624 = vmatprep.subr.mxu0 0.0
    %625 = vmatpush1.msra.mxu0 0.0
    %626 = vmatprep.subr.mxu0 0.0
    %627 = vmatpush1.msra.mxu0 0.0
    %628 = vmatprep.subr.mxu0 0.0
    %629 = vmatpush1.msra.mxu0 0.0
    %630 = vmatprep.subr.mxu0 0.0
    %631 = vmatpush1.msra.mxu0 0.0
    %632 = vmatprep.subr.mxu0 0.0
    %633 = vmatpush1.msra.mxu0 0.0
    %634 = vmatprep.subr.mxu0 0.0
    %635 = vmatpush1.msra.mxu0 0.0
    %636 = vmatprep.subr.mxu0 0.0
    %637 = vmatpush1.msra.mxu0 0.0
    %638 = vmatprep.subr.mxu0 0.0
    %639 = vmatpush1.msra.mxu0 0.0
    %640 = vmatprep.subr.mxu0 0.0
    %641 = vmatpush1.msra.mxu0 0.0
    %642 = vmatprep.mubr.f32.mxu0 0.0
    %643 = vmatmul.mubr.f32.gmra.mrb[0].mxu0 %v576
    %v644 = vpop.f32.mrb[0].mxu0
    %v645 = vadd.f32 0.0, %v644
    %v646 = vpop.f32.mrb[0].mxu0
    %647 = vdwg.mxu0
    %v648 = vadd.f32 %v575, %v645
    %v649 = vxor.u32 %v648, 2147483648
    %v650 = vmul.f32 %v649, 1.442695
    %v651 = vpow.pop %v650
    %v652 = vadd.f32 %v651, 1.0
    %v653 = vrcp.pop %v652
    %v654 = vmul.f32 1.0, %v653
    %v655 = vtanh.pop %v648
    %v656 = vmul.f32 %v654, %v561
    %658 = vrot.lane.b32.xlu0 %v655, 64
    %v659 = vpop.permute.xlu0 %658
    %v661 = vmul.f32 %v654, %v659
    %663 = vrot.lane.b32.xlu0 %v661, 32
    %v664 = vpop.permute.xlu0 %663
    %v666 = vadd.f32 %v656, %v664
    %v667 = vtanh.pop %v666
    %669 = vrot.lane.b32.xlu0 %v667, 64
    %v670 = vpop.permute.xlu0 %669
    %v672 = vmul.f32 %v654, %v670
    %674 = vrot.lane.b32.xlu0 %v672, 32
    %v675 = vpop.permute.xlu0 %674
    %s677 = scalar_lea.vmem [#allocation7], 10
    %678 = vst.msk [vmem:[%s677] sm:$0x3] %vm152, %v675
    %s679 = scalar_lea.vmem [#allocation2], 12
    %v680 = vld [vmem:[%s679] sm:$0x3]
    %v681 = vsel %vm49, %v675, 0
    %683 = vmatprep.subr.mxu0 0.0
    %684 = vmatpush1.msra.mxu0 %v44
    %685 = vmatprep.subr.mxu0 0.0
    %686 = vmatpush1.msra.mxu0 %v45
    %687 = vmatprep.subr.mxu0 0.0
    %688 = vmatpush1.msra.mxu0 %v46
    %689 = vmatprep.subr.mxu0 0.0
    %690 = vmatpush1.msra.mxu0 %v47
    %691 = vmatprep.subr.mxu0 0.0
    %692 = vmatpush1.msra.mxu0 0.0
    %693 = vmatprep.subr.mxu0 0.0
    %694 = vmatpush1.msra.mxu0 0.0
    %695 = vmatprep.subr.mxu0 0.0
    %696 = vmatpush1.msra.mxu0 0.0
    %697 = vmatprep.subr.mxu0 0.0
    %698 = vmatpush1.msra.mxu0 0.0
    %699 = vmatprep.subr.mxu0 0.0
    %700 = vmatpush1.msra.mxu0 0.0
    %701 = vmatprep.subr.mxu0 0.0
    %702 = vmatpush1.msra.mxu0 0.0
    %703 = vmatprep.subr.mxu0 0.0
    %704 = vmatpush1.msra.mxu0 0.0
    %705 = vmatprep.subr.mxu0 0.0
    %706 = vmatpush1.msra.mxu0 0.0
    %707 = vmatprep.subr.mxu0 0.0
    %708 = vmatpush1.msra.mxu0 0.0
    %709 = vmatprep.subr.mxu0 0.0
    %710 = vmatpush1.msra.mxu0 0.0
    %711 = vmatprep.subr.mxu0 0.0
    %712 = vmatpush1.msra.mxu0 0.0
    %713 = vmatprep.subr.mxu0 0.0
    %714 = vmatpush1.msra.mxu0 0.0
    %715 = vmatprep.subr.mxu0 0.0
    %716 = vmatpush1.msra.mxu0 0.0
    %717 = vmatprep.subr.mxu0 0.0
    %718 = vmatpush1.msra.mxu0 0.0
    %719 = vmatprep.subr.mxu0 0.0
    %720 = vmatpush1.msra.mxu0 0.0
    %721 = vmatprep.subr.mxu0 0.0
    %722 = vmatpush1.msra.mxu0 0.0
    %723 = vmatprep.subr.mxu0 0.0
    %724 = vmatpush1.msra.mxu0 0.0
    %725 = vmatprep.subr.mxu0 0.0
    %726 = vmatpush1.msra.mxu0 0.0
    %727 = vmatprep.subr.mxu0 0.0
    %728 = vmatpush1.msra.mxu0 0.0
    %729 = vmatprep.subr.mxu0 0.0
    %730 = vmatpush1.msra.mxu0 0.0
    %731 = vmatprep.subr.mxu0 0.0
    %732 = vmatpush1.msra.mxu0 0.0
    %733 = vmatprep.subr.mxu0 0.0
    %734 = vmatpush1.msra.mxu0 0.0
    %735 = vmatprep.subr.mxu0 0.0
    %736 = vmatpush1.msra.mxu0 0.0
    %737 = vmatprep.subr.mxu0 0.0
    %738 = vmatpush1.msra.mxu0 0.0
    %739 = vmatprep.subr.mxu0 0.0
    %740 = vmatpush1.msra.mxu0 0.0
    %741 = vmatprep.subr.mxu0 0.0
    %742 = vmatpush1.msra.mxu0 0.0
    %743 = vmatprep.subr.mxu0 0.0
    %744 = vmatpush1.msra.mxu0 0.0
    %745 = vmatprep.subr.mxu0 0.0
    %746 = vmatpush1.msra.mxu0 0.0
    %747 = vmatprep.mubr.f32.mxu0 0.0
    %748 = vmatmul.mubr.f32.gmra.mrb[0].mxu0 %v681
    %v749 = vpop.f32.mrb[0].mxu0
    %v750 = vadd.f32 0.0, %v749
    %v751 = vpop.f32.mrb[0].mxu0
    %752 = vdwg.mxu0
    %v753 = vadd.f32 %v680, %v750
    %v754 = vxor.u32 %v753, 2147483648
    %v755 = vmul.f32 %v754, 1.442695
    %v756 = vpow.pop %v755
    %v757 = vadd.f32 %v756, 1.0
    %v758 = vrcp.pop %v757
    %v759 = vmul.f32 1.0, %v758
    %v760 = vtanh.pop %v753
    %v761 = vmul.f32 %v759, %v666
    %763 = vrot.lane.b32.xlu0 %v760, 64
    %v764 = vpop.permute.xlu0 %763
    %v766 = vmul.f32 %v759, %v764
    %768 = vrot.lane.b32.xlu0 %v766, 32
    %v769 = vpop.permute.xlu0 %768
    %v771 = vadd.f32 %v761, %v769
    %v772 = vtanh.pop %v771
    %774 = vrot.lane.b32.xlu0 %v772, 64
    %v775 = vpop.permute.xlu0 %774
    %v777 = vmul.f32 %v759, %v775
    %779 = vrot.lane.b32.xlu0 %v777, 32
    %v780 = vpop.permute.xlu0 %779
    %s782 = scalar_lea.vmem [#allocation7], 12
    %783 = vst.msk [vmem:[%s782] sm:$0x3] %vm152, %v780
    %s784 = scalar_lea.vmem [#allocation2], 14
    %v785 = vld [vmem:[%s784] sm:$0x3]
    %v786 = vsel %vm49, %v780, 0
    %788 = vmatprep.subr.mxu0 0.0
    %789 = vmatpush1.msra.mxu0 %v44
    %790 = vmatprep.subr.mxu0 0.0
    %791 = vmatpush1.msra.mxu0 %v45
    %792 = vmatprep.subr.mxu0 0.0
    %793 = vmatpush1.msra.mxu0 %v46
    %794 = vmatprep.subr.mxu0 0.0
    %795 = vmatpush1.msra.mxu0 %v47
    %796 = vmatprep.subr.mxu0 0.0
    %797 = vmatpush1.msra.mxu0 0.0
    %798 = vmatprep.subr.mxu0 0.0
    %799 = vmatpush1.msra.mxu0 0.0
    %800 = vmatprep.subr.mxu0 0.0
    %801 = vmatpush1.msra.mxu0 0.0
    %802 = vmatprep.subr.mxu0 0.0
    %803 = vmatpush1.msra.mxu0 0.0
    %804 = vmatprep.subr.mxu0 0.0
    %805 = vmatpush1.msra.mxu0 0.0
    %806 = vmatprep.subr.mxu0 0.0
    %807 = vmatpush1.msra.mxu0 0.0
    %808 = vmatprep.subr.mxu0 0.0
    %809 = vmatpush1.msra.mxu0 0.0
    %810 = vmatprep.subr.mxu0 0.0
    %811 = vmatpush1.msra.mxu0 0.0
    %812 = vmatprep.subr.mxu0 0.0
    %813 = vmatpush1.msra.mxu0 0.0
    %814 = vmatprep.subr.mxu0 0.0
    %815 = vmatpush1.msra.mxu0 0.0
    %816 = vmatprep.subr.mxu0 0.0
    %817 = vmatpush1.msra.mxu0 0.0
    %818 = vmatprep.subr.mxu0 0.0
    %819 = vmatpush1.msra.mxu0 0.0
    %820 = vmatprep.subr.mxu0 0.0
    %821 = vmatpush1.msra.mxu0 0.0
    %822 = vmatprep.subr.mxu0 0.0
    %823 = vmatpush1.msra.mxu0 0.0
    %824 = vmatprep.subr.mxu0 0.0
    %825 = vmatpush1.msra.mxu0 0.0
    %826 = vmatprep.subr.mxu0 0.0
    %827 = vmatpush1.msra.mxu0 0.0
    %828 = vmatprep.subr.mxu0 0.0
    %829 = vmatpush1.msra.mxu0 0.0
    %830 = vmatprep.subr.mxu0 0.0
    %831 = vmatpush1.msra.mxu0 0.0
    %832 = vmatprep.subr.mxu0 0.0
    %833 = vmatpush1.msra.mxu0 0.0
    %834 = vmatprep.subr.mxu0 0.0
    %835 = vmatpush1.msra.mxu0 0.0
    %836 = vmatprep.subr.mxu0 0.0
    %837 = vmatpush1.msra.mxu0 0.0
    %838 = vmatprep.subr.mxu0 0.0
    %839 = vmatpush1.msra.mxu0 0.0
    %840 = vmatprep.subr.mxu0 0.0
    %841 = vmatpush1.msra.mxu0 0.0
    %842 = vmatprep.subr.mxu0 0.0
    %843 = vmatpush1.msra.mxu0 0.0
    %844 = vmatprep.subr.mxu0 0.0
    %845 = vmatpush1.msra.mxu0 0.0
    %846 = vmatprep.subr.mxu0 0.0
    %847 = vmatpush1.msra.mxu0 0.0
    %848 = vmatprep.subr.mxu0 0.0
    %849 = vmatpush1.msra.mxu0 0.0
    %850 = vmatprep.subr.mxu0 0.0
    %851 = vmatpush1.msra.mxu0 0.0
    %852 = vmatprep.mubr.f32.mxu0 0.0
    %853 = vmatmul.mubr.f32.gmra.mrb[0].mxu0 %v786
    %v854 = vpop.f32.mrb[0].mxu0
    %v855 = vadd.f32 0.0, %v854
    %v856 = vpop.f32.mrb[0].mxu0
    %857 = vdwg.mxu0
    %v858 = vadd.f32 %v785, %v855
    %v859 = vxor.u32 %v858, 2147483648
    %v860 = vmul.f32 %v859, 1.442695
    %v861 = vpow.pop %v860
    %v862 = vadd.f32 %v861, 1.0
    %v863 = vrcp.pop %v862
    %v864 = vmul.f32 1.0, %v863
    %v865 = vtanh.pop %v858
    %v866 = vmul.f32 %v864, %v771
    %868 = vrot.lane.b32.xlu0 %v865, 64
    %v869 = vpop.permute.xlu0 %868
    %v871 = vmul.f32 %v864, %v869
    %873 = vrot.lane.b32.xlu0 %v871, 32
    %v874 = vpop.permute.xlu0 %873
    %v876 = vadd.f32 %v866, %v874
    %v877 = vtanh.pop %v876
    %879 = vrot.lane.b32.xlu0 %v877, 64
    %v880 = vpop.permute.xlu0 %879
    %v882 = vmul.f32 %v864, %v880
    %884 = vrot.lane.b32.xlu0 %v882, 32
    %v885 = vpop.permute.xlu0 %884
    %s887 = scalar_lea.vmem [#allocation7], 14
    %888 = vst.msk [vmem:[%s887] sm:$0x3] %vm152, %v885
    %889 = vst.msk [vmem:[#allocation8] sm:$0x3] %vm152, %v885
    %891 = vrot.lane.b32.xlu0 %v876, 96
    %v892 = vpop.permute.xlu0 %891
    %894 = vst.msk [vmem:[#allocation10] sm:$0x3] %vm152, %v892
    // Predicated region
    $region18: #{tpu_custom_call.1} parent=1 // pred_check
      _
    $region19: #{tpu_custom_call.1} parent=1 // pred_check_branch
      %896 = sbr.rel (0) target = $region21
    $region20: #{tpu_custom_call.1} parent=1 // pred_region
      %s898 = ssub.s32 256, 256
      %899 = vsyncadd [#allocation4], %s898
      %s900 = sshll.u32 [#allocation7], 4
      %s901 = int_to_ptr.vmem [resolvable:$true] %s900
      %906 = dma.vmem_to_hbm [thread:$0]  %s901, 256, %s2, [#allocation4], 32, 32, 2
    $region21: #{tpu_custom_call.1} parent=1 // pred_fallthru
      _
    // Predicated region
    $region22: #{tpu_custom_call.1} parent=1 // pred_check
      _
    $region23: #{tpu_custom_call.1} parent=1 // pred_check_branch
      %908 = sbr.rel (0) target = $region25
    $region24: #{tpu_custom_call.1} parent=1 // pred_region
      %s910 = ssub.s32 32, 32
      %911 = vsyncadd [#allocation9], %s910
      %s913 = sshll.u32 [#allocation8], 4
      %s914 = int_to_ptr.vmem [resolvable:$true] %s913
      %916 = dma.vmem_to_hbm [thread:$0]  %s914, 32, %s3, [#allocation9]
    $region25: #{tpu_custom_call.1} parent=1 // pred_fallthru
      _
    // Predicated region
    $region26: #{tpu_custom_call.1} parent=1 // pred_check
      _
    $region27: #{tpu_custom_call.1} parent=1 // pred_check_branch
      %918 = sbr.rel (0) target = $region29
    $region28: #{tpu_custom_call.1} parent=1 // pred_region
      %s920 = ssub.s32 32, 32
      %921 = vsyncadd [#allocation9], %s920
      %s923 = sshll.u32 [#allocation10], 4
      %s924 = int_to_ptr.vmem [resolvable:$true] %s923
      %926 = dma.vmem_to_hbm [thread:$0]  %s924, 32, %s4, [#allocation9]
    $region29: #{tpu_custom_call.1} parent=1 // pred_fallthru
      _
    // Predicated region
    $region30: #{tpu_custom_call.1} parent=1 // pred_check
      _
    $region31: #{tpu_custom_call.1} parent=1 // pred_check_branch
      %928 = sbr.rel (0) target = $region33
    $region32: #{tpu_custom_call.1} parent=1 // pred_region
      %929 = dma.done [#allocation4], 256
    $region33: #{tpu_custom_call.1} parent=1 // pred_fallthru
      _
    // Predicated region
    $region34: #{tpu_custom_call.1} parent=1 // pred_check
      _
    $region35: #{tpu_custom_call.1} parent=1 // pred_check_branch
      %931 = sbr.rel (0) target = $region37
    $region36: #{tpu_custom_call.1} parent=1 // pred_region
      %932 = dma.done [#allocation9], 32
    $region37: #{tpu_custom_call.1} parent=1 // pred_fallthru
      _
    // Predicated region
    $region38: #{tpu_custom_call.1} parent=1 // pred_check
      _
    $region39: #{tpu_custom_call.1} parent=1 // pred_check_branch
      %934 = sbr.rel (0) target = $region41
    $region40: #{tpu_custom_call.1} parent=1 // pred_region
      %935 = dma.done [#allocation9], 32
    $region41: #{tpu_custom_call.1} parent=1 // pred_fallthru
      _
    %936 = vsyncpa [#allocation3], 1
    %937 = vsyncpa [#allocation6], 1
    %938 = vsyncpa [#allocation4], 1
    %939 = vsyncpa [#allocation9], 1

</llo_original>
